<compile_context>
chip_gen: v7x
topology: tpu7x:2x2x1
jax: 0.10.0
libtpu: 0.0.40
codegen_flags: <defaults>
</compile_context>

<pallas_src>
import jax
import jax.numpy as jnp
from jax.experimental import pallas as pl
from jax.experimental.pallas import tpu as pltpu


def _round_up(x, m):
    return (x + m - 1) // m * m


def encoder_gru_kernel(tok_ref, emb_ref, wx_ref, bx_ref, wh_ref, bh_ref, h_ref, o_ref):
    """Fused embedding-gather + GRU-cell step for one batch tile.

    tok_ref : (tn, 1)   int32     token ids for this batch tile
    emb_ref : (V, E)    bf16      embedding table (resident across tiles)
    wx_ref  : (E, 3H)   bf16      [w_ih | w_c]     (pre-transposed: x @ W + b)
    bx_ref  : (1, 3H)   f32       [b_ih | b_c]
    wh_ref  : (H, 3H)   bf16      [w_hh | w_hc]
    bh_ref  : (1, 3H)   f32       [b_hh | b_hc]
    h_ref   : (tn, H)   f32       previous hidden state
    o_ref   : (tn, H)   f32       new hidden state
    """
    V = emb_ref.shape[0]
    H = h_ref.shape[-1]
    tn = h_ref.shape[0]

    # ---- in-kernel embedding gather via one-hot matmul (exact for bf16 rows) ----
    tok = tok_ref[...]                                                # (tn, 1) int32
    lane_ids = jax.lax.broadcasted_iota(jnp.int32, (tn, V), 1)        # (tn, V)
    onehot = (tok == lane_ids).astype(emb_ref.dtype)                  # (tn, V) bf16
    x = jnp.dot(onehot, emb_ref[...],
                preferred_element_type=jnp.float32)                   # (tn, E) f32 (exact)
    x = x.astype(wx_ref.dtype)                                        # back to bf16, exact

    h = h_ref[...]                                                    # (tn, H) f32

    # ---- fused projections: 2 MXU matmuls instead of 4, f32 accumulation ----
    xb = jnp.dot(x, wx_ref[...],
                 preferred_element_type=jnp.float32) + bx_ref[...]    # (tn, 3H) f32
    hb = jnp.dot(h.astype(wh_ref.dtype), wh_ref[...],
                 preferred_element_type=jnp.float32) + bh_ref[...]    # (tn, 3H) f32

    # ---- gating, all in f32 on the VPU/EUP ----
    gates = jax.nn.sigmoid(xb[:, :2 * H] + hb[:, :2 * H])             # (tn, 2H)
    z_t = gates[:, :H]
    r_t = gates[:, H:]
    cand = jnp.tanh(xb[:, 2 * H:] + r_t * hb[:, 2 * H:])              # (tn, H)

    o_ref[...] = (1.0 - z_t) * h + z_t * cand


def encoder_rnn_forward(tokens, hidden, params, *, block_n=256):
    """EncoderRNN.forward: one fused Pallas call (gather + GRU cell), batch-tiled."""
    N, H = hidden.shape
    V, E = params["embedding"].shape

    # Pad batch to a sublane-friendly tile size (f32 sublane = 8).
    tn = min(block_n, _round_up(N, 8))
    Np = _round_up(N, tn)

    tok2d = tokens.astype(jnp.int32).reshape(-1, 1)                   # (N, 1)
    if Np != N:
        tok2d = jnp.pad(tok2d, ((0, Np - N), (0, 0)))
        hidden_p = jnp.pad(hidden, ((0, Np - N), (0, 0)))
    else:
        hidden_p = hidden

    grid = (Np // tn,)

    flops = 2 * Np * (V * E + E * 3 * H + H * 3 * H)
    transcendentals = 3 * Np * H
    bytes_accessed = (Np * 4                      # tokens
                      + V * E * 2                 # embedding (bf16)
                      + (E + H) * 3 * H * 2       # fused weights (bf16)
                      + 2 * 3 * H * 4             # fused biases (f32)
                      + 2 * Np * H * 4)           # hidden in + hidden out (f32)

    const = lambda i: (0, 0)   # weights / table / biases stay resident across tiles

    return_padded = pl.pallas_call(
        encoder_gru_kernel,
        out_shape=jax.ShapeDtypeStruct((Np, H), jnp.float32),
        grid_spec=pltpu.PrefetchScalarGridSpec(
            num_scalar_prefetch=0,
            grid=grid,
            in_specs=[
                pl.BlockSpec((tn, 1), lambda i: (i, 0)),      # tokens (per batch tile)
                pl.BlockSpec((V, E), const),                  # embedding table
                pl.BlockSpec((E, 3 * H), const),              # W_x
                pl.BlockSpec((1, 3 * H), const),              # b_x
                pl.BlockSpec((H, 3 * H), const),              # W_h
                pl.BlockSpec((1, 3 * H), const),              # b_h
                pl.BlockSpec((tn, H), lambda i: (i, 0)),      # hidden (per batch tile)
            ],
            out_specs=pl.BlockSpec((tn, H), lambda i: (i, 0)),
        ),
        compiler_params=pltpu.CompilerParams(
            dimension_semantics=("parallel",),                # shards batch tiles on v7x
            vmem_limit_bytes=32 * 1024 * 1024,
        ),
        cost_estimate=pl.CostEstimate(
            flops=int(flops),
            transcendentals=int(transcendentals),
            bytes_accessed=int(bytes_accessed),
        ),
    )(tok2d, params["embedding"],
      params["w_x"], params["b_x"],
      params["w_h"], params["b_h"],
      hidden_p)

    return return_padded if Np == N else return_padded[:N]


def encoder_rnn_reference(tokens, hidden, params):
    """Pure-JAX (f32) reference of the PyTorch forward, using the fused parameters."""
    emb = params["embedding"].astype(jnp.float32)
    wx = params["w_x"].astype(jnp.float32)
    wh = params["w_h"].astype(jnp.float32)
    x = jnp.take(emb, tokens, axis=0)
    h = hidden
    H = h.shape[-1]
    xb = x @ wx + params["b_x"]
    hb = h @ wh + params["b_h"]
    gates = jax.nn.sigmoid(xb[:, :2 * H] + hb[:, :2 * H])
    z_t, r_t = gates[:, :H], gates[:, H:]
    cand = jnp.tanh(xb[:, 2 * H:] + r_t * hb[:, 2 * H:])
    return (1.0 - z_t) * h + z_t * cand


def init_params(key, vocab_size, embedding_dim, hidden_size, *, weight_dtype=jnp.bfloat16):
    """Fused parameter layout: W_x=[w_ih|w_c], W_h=[w_hh|w_hc], b_x=[b_ih|b_c], b_h=[b_hh|b_hc].

    Linear weights are stored pre-transposed as (in, out) = W.T relative to PyTorch,
    so the kernel computes x @ W + b (== PyTorch x @ W.T + b).
    """
    ks = jax.random.split(key, 9)
    s = 0.1
    H, E, V = hidden_size, embedding_dim, vocab_size

    embedding = jax.random.normal(ks[0], (V, E), jnp.float32) * s
    w_ih = jax.random.normal(ks[1], (E, 2 * H), jnp.float32) * s
    b_ih = jax.random.normal(ks[2], (1, 2 * H), jnp.float32) * s
    w_hh = jax.random.normal(ks[3], (H, 2 * H), jnp.float32) * s
    b_hh = jax.random.normal(ks[4], (1, 2 * H), jnp.float32) * s
    w_c = jax.random.normal(ks[5], (E, H), jnp.float32) * s
    b_c = jax.random.normal(ks[6], (1, H), jnp.float32) * s
    w_hc = jax.random.normal(ks[7], (H, H), jnp.float32) * s
    b_hc = jax.random.normal(ks[8], (1, H), jnp.float32) * s

    return {
        "embedding": embedding.astype(weight_dtype),
        "w_x": jnp.concatenate([w_ih, w_c], axis=1).astype(weight_dtype),   # (E, 3H)
        "b_x": jnp.concatenate([b_ih, b_c], axis=1),                        # (1, 3H) f32
        "w_h": jnp.concatenate([w_hh, w_hc], axis=1).astype(weight_dtype),  # (H, 3H)
        "b_h": jnp.concatenate([b_hh, b_hc], axis=1),                       # (1, 3H) f32
    }


if __name__ == "__main__":
    # Small but lane/sublane-aligned sizes (H = E = 128 lanes, N = 8 f32 sublanes).
    vocab_size = 64
    embedding_dim = 128
    hidden_size = 128
    batch = 8

    key = jax.random.PRNGKey(0)
    k_params, k_tok, k_hid = jax.random.split(key, 3)

    params = init_params(k_params, vocab_size, embedding_dim, hidden_size)
    tokens = jax.random.randint(k_tok, (batch,), 0, vocab_size, dtype=jnp.int32)  # input: N
    hidden = jax.random.normal(k_hid, (batch, hidden_size), jnp.float32)          # hidden: N x H

    out = encoder_rnn_forward(tokens, hidden, params)
    out = jax.block_until_ready(out)

    ref = encoder_rnn_reference(tokens, hidden, params)
    assert out.shape == (batch, hidden_size)
    # bf16 weights / bf16 MXU inputs with f32 accumulation -> loosened tolerance vs f32 ref.
    assert jnp.allclose(out, ref, atol=2e-2, rtol=2e-2), "Pallas kernel mismatch vs reference"

    print("KERNEL_OK")
</pallas_src>

<mosaic_0001>
module attributes {stable_mosaic.version = 11 : i64} {
  func.func @encoder_gru_kernel(%arg0: i32, %arg1: memref<8x1xi32, #tpu.memory_space<vmem>>, %arg2: memref<64x128xbf16, #tpu.memory_space<vmem>>, %arg3: memref<128x384xbf16, #tpu.memory_space<vmem>>, %arg4: memref<1x384xf32, #tpu.memory_space<vmem>>, %arg5: memref<128x384xbf16, #tpu.memory_space<vmem>>, %arg6: memref<1x384xf32, #tpu.memory_space<vmem>>, %arg7: memref<8x128xf32, #tpu.memory_space<vmem>>, %arg8: memref<8x128xf32, #tpu.memory_space<vmem>>) attributes {dimension_semantics = [#tpu.dimension_semantics<parallel>], iteration_bounds = array<i64: 1>, scalar_prefetch = 0 : i64, scratch_operands = 0 : i64, tpu.core_type = #tpu.core_type<tc>, window_params = [{transform_indices = @transform_0, window_bounds = array<i64: 8, 1>}, {pipeline_mode = #tpu.pipeline_mode<synchronous>, transform_indices = @transform_1, window_bounds = array<i64: 64, 128>}, {pipeline_mode = #tpu.pipeline_mode<synchronous>, transform_indices = @transform_2, window_bounds = array<i64: 128, 384>}, {pipeline_mode = #tpu.pipeline_mode<synchronous>, transform_indices = @transform_3, window_bounds = array<i64: 1, 384>}, {pipeline_mode = #tpu.pipeline_mode<synchronous>, transform_indices = @transform_4, window_bounds = array<i64: 128, 384>}, {pipeline_mode = #tpu.pipeline_mode<synchronous>, transform_indices = @transform_5, window_bounds = array<i64: 1, 384>}, {transform_indices = @transform_6, window_bounds = array<i64: 8, 128>}, {transform_indices = @transform_7, window_bounds = array<i64: 8, 128>}]} {
    %c0 = arith.constant 0 : index
    %c0_0 = arith.constant 0 : index
    %0 = vector.load %arg1[%c0, %c0_0] : memref<8x1xi32, #tpu.memory_space<vmem>>, vector<8x1xi32>
    %1 = tpu.iota {dimensions = array<i32: 1>} : vector<8x64xi32>
    %2 = vector.broadcast %0 : vector<8x1xi32> to vector<8x64xi32>
    %3 = arith.cmpi eq, %2, %1 : vector<8x64xi32>
    %4 = arith.extui %3 : vector<8x64xi1> to vector<8x64xi32>
    %5 = arith.sitofp %4 : vector<8x64xi32> to vector<8x64xf32>
    %6 = arith.truncf %5 : vector<8x64xf32> to vector<8x64xbf16>
    %c0_1 = arith.constant 0 : index
    %c0_2 = arith.constant 0 : index
    %7 = vector.load %arg2[%c0_1, %c0_2] : memref<64x128xbf16, #tpu.memory_space<vmem>>, vector<64x128xbf16>
    %cst = arith.constant dense<0.000000e+00> : vector<8x128xf32>
    %8 = tpu.matmul %6, %7, %cst {dimension_numbers = #tpu.dot_dimension_numbers<[1], [0], [0], [1], [0, 0, 1, 1], [], []>} : vector<8x64xbf16>, vector<64x128xbf16>, vector<8x128xf32> -> vector<8x128xf32>
    %9 = arith.truncf %8 : vector<8x128xf32> to vector<8x128xbf16>
    %c0_3 = arith.constant 0 : index
    %c0_4 = arith.constant 0 : index
    %10 = vector.load %arg7[%c0_3, %c0_4] : memref<8x128xf32, #tpu.memory_space<vmem>>, vector<8x128xf32>
    %c0_5 = arith.constant 0 : index
    %c0_6 = arith.constant 0 : index
    %11 = vector.load %arg3[%c0_5, %c0_6] : memref<128x384xbf16, #tpu.memory_space<vmem>>, vector<128x384xbf16>
    %cst_7 = arith.constant dense<0.000000e+00> : vector<8x384xf32>
    %12 = tpu.matmul %9, %11, %cst_7 {dimension_numbers = #tpu.dot_dimension_numbers<[1], [0], [0], [1], [0, 0, 1, 1], [], []>} : vector<8x128xbf16>, vector<128x384xbf16>, vector<8x384xf32> -> vector<8x384xf32>
    %c0_8 = arith.constant 0 : index
    %c0_9 = arith.constant 0 : index
    %13 = vector.load %arg4[%c0_8, %c0_9] : memref<1x384xf32, #tpu.memory_space<vmem>>, vector<1x384xf32>
    %14 = vector.broadcast %13 : vector<1x384xf32> to vector<8x384xf32>
    %15 = arith.addf %12, %14 : vector<8x384xf32>
    %16 = arith.truncf %10 : vector<8x128xf32> to vector<8x128xbf16>
    %c0_10 = arith.constant 0 : index
    %c0_11 = arith.constant 0 : index
    %17 = vector.load %arg5[%c0_10, %c0_11] : memref<128x384xbf16, #tpu.memory_space<vmem>>, vector<128x384xbf16>
    %cst_12 = arith.constant dense<0.000000e+00> : vector<8x384xf32>
    %18 = tpu.matmul %16, %17, %cst_12 {dimension_numbers = #tpu.dot_dimension_numbers<[1], [0], [0], [1], [0, 0, 1, 1], [], []>} : vector<8x128xbf16>, vector<128x384xbf16>, vector<8x384xf32> -> vector<8x384xf32>
    %c0_13 = arith.constant 0 : index
    %c0_14 = arith.constant 0 : index
    %19 = vector.load %arg6[%c0_13, %c0_14] : memref<1x384xf32, #tpu.memory_space<vmem>>, vector<1x384xf32>
    %20 = vector.broadcast %19 : vector<1x384xf32> to vector<8x384xf32>
    %21 = arith.addf %18, %20 : vector<8x384xf32>
    %22 = vector.extract_strided_slice %15 {offsets = [0, 0], sizes = [8, 256], strides = [1, 1]} : vector<8x384xf32> to vector<8x256xf32>
    %23 = vector.extract_strided_slice %21 {offsets = [0, 0], sizes = [8, 256], strides = [1, 1]} : vector<8x384xf32> to vector<8x256xf32>
    %24 = arith.addf %22, %23 : vector<8x256xf32>
    %25 = arith.negf %24 : vector<8x256xf32>
    %26 = math.exp %25 : vector<8x256xf32>
    %cst_15 = arith.constant 1.000000e+00 : f32
    %27 = vector.broadcast %cst_15 : f32 to vector<8x256xf32>
    %28 = arith.addf %27, %26 : vector<8x256xf32>
    %29 = arith.divf %27, %28 : vector<8x256xf32>
    %30 = vector.extract_strided_slice %29 {offsets = [0, 0], sizes = [8, 128], strides = [1, 1]} : vector<8x256xf32> to vector<8x128xf32>
    %31 = vector.extract_strided_slice %29 {offsets = [0, 128], sizes = [8, 128], strides = [1, 1]} : vector<8x256xf32> to vector<8x128xf32>
    %32 = vector.extract_strided_slice %15 {offsets = [0, 256], sizes = [8, 128], strides = [1, 1]} : vector<8x384xf32> to vector<8x128xf32>
    %33 = vector.extract_strided_slice %21 {offsets = [0, 256], sizes = [8, 128], strides = [1, 1]} : vector<8x384xf32> to vector<8x128xf32>
    %34 = arith.mulf %31, %33 : vector<8x128xf32>
    %35 = arith.addf %32, %34 : vector<8x128xf32>
    %36 = math.tanh %35 : vector<8x128xf32>
    %cst_16 = arith.constant 1.000000e+00 : f32
    %37 = vector.broadcast %cst_16 : f32 to vector<8x128xf32>
    %38 = arith.subf %37, %30 : vector<8x128xf32>
    %39 = arith.mulf %38, %10 : vector<8x128xf32>
    %40 = arith.mulf %30, %36 : vector<8x128xf32>
    %41 = arith.addf %39, %40 : vector<8x128xf32>
    %c0_17 = arith.constant 0 : index
    %c0_18 = arith.constant 0 : index
    %42 = vector.load %arg8[%c0_17, %c0_18] : memref<8x128xf32, #tpu.memory_space<vmem>>, vector<8x128xf32>
    tpu.vector_store %arg8[%c0_17, %c0_18], %41 {strides = array<i32>} : memref<8x128xf32, #tpu.memory_space<vmem>>, vector<8x128xf32>,
    return
  }
  func.func @transform_0(%arg0: i32) -> (i32, i32) {
    %c0_i32 = arith.constant 0 : i32
    %c0_i32_0 = arith.constant 0 : i32
    return %arg0, %c0_i32 : i32, i32
  }
  func.func @transform_1(%arg0: i32) -> (i32, i32) {
    %c0_i32 = arith.constant 0 : i32
    %c0_i32_0 = arith.constant 0 : i32
    %c0_i32_1 = arith.constant 0 : i32
    return %c0_i32, %c0_i32_0 : i32, i32
  }
  func.func @transform_2(%arg0: i32) -> (i32, i32) {
    %c0_i32 = arith.constant 0 : i32
    %c0_i32_0 = arith.constant 0 : i32
    %c0_i32_1 = arith.constant 0 : i32
    return %c0_i32, %c0_i32_0 : i32, i32
  }
  func.func @transform_3(%arg0: i32) -> (i32, i32) {
    %c0_i32 = arith.constant 0 : i32
    %c0_i32_0 = arith.constant 0 : i32
    %c0_i32_1 = arith.constant 0 : i32
    return %c0_i32, %c0_i32_0 : i32, i32
  }
  func.func @transform_4(%arg0: i32) -> (i32, i32) {
    %c0_i32 = arith.constant 0 : i32
    %c0_i32_0 = arith.constant 0 : i32
    %c0_i32_1 = arith.constant 0 : i32
    return %c0_i32, %c0_i32_0 : i32, i32
  }
  func.func @transform_5(%arg0: i32) -> (i32, i32) {
    %c0_i32 = arith.constant 0 : i32
    %c0_i32_0 = arith.constant 0 : i32
    %c0_i32_1 = arith.constant 0 : i32
    return %c0_i32, %c0_i32_0 : i32, i32
  }
  func.func @transform_6(%arg0: i32) -> (i32, i32) {
    %c0_i32 = arith.constant 0 : i32
    %c0_i32_0 = arith.constant 0 : i32
    return %arg0, %c0_i32 : i32, i32
  }
  func.func @transform_7(%arg0: i32) -> (i32, i32) {
    %c0_i32 = arith.constant 0 : i32
    %c0_i32_0 = arith.constant 0 : i32
    return %arg0, %c0_i32 : i32, i32
  }
}

</mosaic_0001>

<llo_original>
// kernel: tpu_custom_call.1
$region0: #{tpu_custom_call.1}
  #allocation0 [shape = 'u32[]', space=smem, size = 0x4, offset = 0x4, fixed_abs, tag = 'smem constant byte address 0x4 - core index']
  #allocation1 [shape = 'u32[144,128]{1,0:T(1,128)}', space=vmem, size = 0x12000, scoped, tag = 'internal scratch']
  %s0 = inlined_call_operand.vmem [shape: s32[8,1], index: 0, kind: input, shape index: {}]
  %s1 = inlined_call_operand.hbm [shape: bf16[64,128], index: 1, kind: input, shape index: {}]
  %s2 = inlined_call_operand.hbm [shape: bf16[128,384], index: 2, kind: input, shape index: {}]
  %s3 = inlined_call_operand.vmem [shape: f32[1,384], index: 3, kind: input, shape index: {}]
  %s4 = inlined_call_operand.hbm [shape: bf16[128,384], index: 4, kind: input, shape index: {}]
  %s5 = inlined_call_operand.vmem [shape: f32[1,384], index: 5, kind: input, shape index: {}]
  %s6 = inlined_call_operand.vmem [shape: f32[8,128], index: 6, kind: input, shape index: {}]
  %s7 = inlined_call_operand.hbm [shape: f32[8,128], index: 7, kind: output, shape index: {}]
  %s8 = sld [smem:[#allocation0]]
  $region50: #{tpu_custom_call.1} parent=0
    _
  %s10 = ssub.s32 1, %s8
  %s11 = scalar_select 0, %s10, %s8
  $region1: #{tpu_custom_call.1} parent=0
    #allocation2 [shape = 'u8[16384]{0}', space=vmem, size = 0x4000, scoped, tag = 'input window, operand 1, single buffered']
    #allocation3 [shape = 's32[1]{0}', space=sflag, size = 0x4, scoped, tag = 'scoped memory for tpu_custom_call.1']
    #allocation4 [shape = 's32[1]{0}', space=sflag, size = 0x4, scoped, tag = 'scoped memory for tpu_custom_call.1']
    #allocation5 [shape = 'u8[98304]{0}', space=vmem, size = 0x18000, scoped, tag = 'input window, operand 2, single buffered']
    #allocation6 [shape = 's32[1]{0}', space=sflag, size = 0x4, scoped, tag = 'scoped memory for tpu_custom_call.1']
    #allocation7 [shape = 'u8[98304]{0}', space=vmem, size = 0x18000, scoped, tag = 'input window, operand 4, single buffered']
    #allocation8 [shape = 'u8[4096]{0}', space=vmem, size = 0x1000, scoped, tag = 'output window, operand 0, single buffered']
    %12 = vsyncpa [#allocation3], 0
    %13 = vsyncpa [#allocation6], 0
    %14 = vsyncpa [#allocation4], 0
    // Predicated region
    $region2: #{tpu_custom_call.1} parent=1 // pred_check
      _
    $region3: #{tpu_custom_call.1} parent=1 // pred_check_branch
      %16 = sbr.rel (0) target = $region5
    $region4: #{tpu_custom_call.1} parent=1 // pred_region
      _
    $region5: #{tpu_custom_call.1} parent=1 // pred_fallthru
      _
    // Predicated region
    $region6: #{tpu_custom_call.1} parent=1 // pred_check
      _
    $region7: #{tpu_custom_call.1} parent=1 // pred_check_branch
      %18 = sbr.rel (0) target = $region9
    $region8: #{tpu_custom_call.1} parent=1 // pred_region
      %s20 = ssub.s32 512, 512
      %21 = vsyncadd [#allocation3], %s20
      %s22 = sshll.u32 [#allocation2], 4
      %s23 = int_to_ptr.vmem [resolvable:$true] %s22
      %28 = dma.hbm_to_vmem [thread:$0]  %s1, 512, %s23, [#allocation3], 64, 64, 4
    $region9: #{tpu_custom_call.1} parent=1 // pred_fallthru
      _
    // Predicated region
    $region10: #{tpu_custom_call.1} parent=1 // pred_check
      _
    $region11: #{tpu_custom_call.1} parent=1 // pred_check_branch
      %30 = sbr.rel (0) target = $region13
    $region12: #{tpu_custom_call.1} parent=1 // pred_region
      %s32 = ssub.s32 3072, 3072
      %33 = vsyncadd [#allocation6], %s32
      %s34 = sshll.u32 [#allocation5], 4
      %s35 = int_to_ptr.vmem [resolvable:$true] %s34
      %40 = dma.hbm_to_vmem [thread:$0]  %s2, 3072, %s35, [#allocation6], 192, 192, 12
    $region13: #{tpu_custom_call.1} parent=1 // pred_fallthru
      _
    // Predicated region
    $region14: #{tpu_custom_call.1} parent=1 // pred_check
      _
    $region15: #{tpu_custom_call.1} parent=1 // pred_check_branch
      %42 = sbr.rel (0) target = $region17
    $region16: #{tpu_custom_call.1} parent=1 // pred_region
      _
    $region17: #{tpu_custom_call.1} parent=1 // pred_fallthru
      _
    // Predicated region
    $region18: #{tpu_custom_call.1} parent=1 // pred_check
      _
    $region19: #{tpu_custom_call.1} parent=1 // pred_check_branch
      %44 = sbr.rel (0) target = $region21
    $region20: #{tpu_custom_call.1} parent=1 // pred_region
      %s46 = ssub.s32 3072, 3072
      %47 = vsyncadd [#allocation6], %s46
      %s48 = sshll.u32 [#allocation7], 4
      %s49 = int_to_ptr.vmem [resolvable:$true] %s48
      %54 = dma.hbm_to_vmem [thread:$0]  %s4, 3072, %s49, [#allocation6], 192, 192, 12
    $region21: #{tpu_custom_call.1} parent=1 // pred_fallthru
      _
    // Predicated region
    $region22: #{tpu_custom_call.1} parent=1 // pred_check
      _
    $region23: #{tpu_custom_call.1} parent=1 // pred_check_branch
      %56 = sbr.rel (0) target = $region25
    $region24: #{tpu_custom_call.1} parent=1 // pred_region
      _
    $region25: #{tpu_custom_call.1} parent=1 // pred_fallthru
      _
    // Predicated region
    $region26: #{tpu_custom_call.1} parent=1 // pred_check
      _
    $region27: #{tpu_custom_call.1} parent=1 // pred_check_branch
      %58 = sbr.rel (0) target = $region29
    $region28: #{tpu_custom_call.1} parent=1 // pred_region
      _
    $region29: #{tpu_custom_call.1} parent=1 // pred_fallthru
      _
    // Predicated region
    $region30: #{tpu_custom_call.1} parent=1 // pred_check
      _
    $region31: #{tpu_custom_call.1} parent=1 // pred_check_branch
      %60 = sbr.rel (0) target = $region33
    $region32: #{tpu_custom_call.1} parent=1 // pred_region
      %61 = dma.done [#allocation3], 512
    $region33: #{tpu_custom_call.1} parent=1 // pred_fallthru
      _
    // Predicated region
    $region34: #{tpu_custom_call.1} parent=1 // pred_check
      _
    $region35: #{tpu_custom_call.1} parent=1 // pred_check_branch
      %63 = sbr.rel (0) target = $region37
    $region36: #{tpu_custom_call.1} parent=1 // pred_region
      %64 = dma.done [#allocation6], 3072
    $region37: #{tpu_custom_call.1} parent=1 // pred_fallthru
      _
    // Predicated region
    $region38: #{tpu_custom_call.1} parent=1 // pred_check
      _
    $region39: #{tpu_custom_call.1} parent=1 // pred_check_branch
      %66 = sbr.rel (0) target = $region41
    $region40: #{tpu_custom_call.1} parent=1 // pred_region
      %67 = dma.done [#allocation6], 3072
    $region41: #{tpu_custom_call.1} parent=1 // pred_fallthru
      _
    %v69 = vld [vmem:[%s0] sm:$0xff]
    %v70 = vlaneseq
    %v71 = vand.u32 %v70, 127
    %72 = vset.pattern.permute.xlu0 0
    %73 = vperm.xlu0 %72, %v69
    %v74 = vpop.permute.xlu0 %73
    %vm75 = vcmp.eq.s32.totalorder %v74, %v71
    %v76 = vsel %vm75, 1, 0
    %v77 = vcvt.s32.f32 %v76
    %v78 = vpack.c.bf16 %v77, %v77
    %v79 = vld [vmem:[#allocation2] sm:$0xf]
    %v80 = vld [vmem:[#allocation2 + $0x4] sm:$0xf]
    %v81 = vld [vmem:[#allocation2 + $0x8] sm:$0xf]
    %v82 = vld [vmem:[#allocation2 + $0xc] sm:$0xf]
    %v83 = vld [vmem:[#allocation2 + $0x10] sm:$0xf]
    %v84 = vld [vmem:[#allocation2 + $0x14] sm:$0xf]
    %v85 = vld [vmem:[#allocation2 + $0x18] sm:$0xf]
    %v86 = vld [vmem:[#allocation2 + $0x1c] sm:$0xf]
    %v95 = vunpack.c.l.b16 %v79
    %v96 = vunpack.c.l.b16 %v80
    %v97 = vunpack.c.l.b16 %v81
    %v98 = vunpack.c.l.b16 %v82
    %v99 = vunpack.c.l.b16 %v83
    %v100 = vunpack.c.l.b16 %v84
    %v101 = vunpack.c.l.b16 %v85
    %v102 = vunpack.c.l.b16 %v86
    %v103 = vpack.c.b16 %v96, %v95
    %v104 = vpack.c.b16 %v98, %v97
    %v105 = vpack.c.b16 %v100, %v99
    %v106 = vpack.c.b16 %v102, %v101
    %vm111 = vcmask 523264
    %v113 = vsel %vm111, %v78, 0
    %115 = vmatprep.subr.bf16.mxu0 0
    %116 = vmatpush1.bf16.msra.mxu0 %v103
    %117 = vmatprep.subr.bf16.mxu0 0
    %118 = vmatpush1.bf16.msra.mxu0 %v104
    %119 = vmatprep.subr.bf16.mxu0 0
    %120 = vmatpush1.bf16.msra.mxu0 %v105
    %121 = vmatprep.subr.bf16.mxu0 0
    %122 = vmatpush1.bf16.msra.mxu0 %v106
    %123 = vmatprep.subr.bf16.mxu0 0
    %124 = vmatpush1.bf16.msra.mxu0 0
    %125 = vmatprep.subr.bf16.mxu0 0
    %126 = vmatpush1.bf16.msra.mxu0 0
    %127 = vmatprep.subr.bf16.mxu0 0
    %128 = vmatpush1.bf16.msra.mxu0 0
    %129 = vmatprep.subr.bf16.mxu0 0
    %130 = vmatpush1.bf16.msra.mxu0 0
    %131 = vmatprep.subr.bf16.mxu0 0
    %132 = vmatpush1.bf16.msra.mxu0 0
    %133 = vmatprep.subr.bf16.mxu0 0
    %134 = vmatpush1.bf16.msra.mxu0 0
    %135 = vmatprep.subr.bf16.mxu0 0
    %136 = vmatpush1.bf16.msra.mxu0 0
    %137 = vmatprep.subr.bf16.mxu0 0
    %138 = vmatpush1.bf16.msra.mxu0 0
    %139 = vmatprep.subr.bf16.mxu0 0
    %140 = vmatpush1.bf16.msra.mxu0 0
    %141 = vmatprep.subr.bf16.mxu0 0
    %142 = vmatpush1.bf16.msra.mxu0 0
    %143 = vmatprep.subr.bf16.mxu0 0
    %144 = vmatpush1.bf16.msra.mxu0 0
    %145 = vmatprep.subr.bf16.mxu0 0
    %146 = vmatpush1.bf16.msra.mxu0 0
    %147 = vmatprep.mubr.bf16.mxu0 0
    %148 = vmatmul.mubr.bf16.gmra.mrb[0].mxu0 %v113
    %v149 = vpop.f32.mrb[0].mxu0
    %v150 = vadd.f32 0.0, %v149
    %v151 = vpop.f32.mrb[0].mxu0
    %v152 = vpop.f32.mrb[0].mxu0
    %v153 = vpop.f32.mrb[0].mxu0
    %154 = vdwg.mxu0
    %v155 = vpack.c.bf16 %v150, %v150
    %v156 = vld [vmem:[%s6] sm:$0xff]
    %v157 = vld [vmem:[#allocation5] sm:$0xff]
    %v158 = vld [vmem:[#allocation5 + $0x8] sm:$0xf]
    %v159 = vld [vmem:[#allocation5 + $0xc] sm:$0xff]
    %v160 = vld [vmem:[#allocation5 + $0x14] sm:$0xf]
    %v161 = vld [vmem:[#allocation5 + $0x18] sm:$0xff]
    %v162 = vld [vmem:[#allocation5 + $0x20] sm:$0xf]
    %v163 = vld [vmem:[#allocation5 + $0x24] sm:$0xff]
    %v164 = vld [vmem:[#allocation5 + $0x2c] sm:$0xf]
    %v165 = vld [vmem:[#allocation5 + $0x30] sm:$0xff]
    %v166 = vld [vmem:[#allocation5 + $0x38] sm:$0xf]
    %v167 = vld [vmem:[#allocation5 + $0x3c] sm:$0xff]
    %v168 = vld [vmem:[#allocation5 + $0x44] sm:$0xf]
    %v169 = vld [vmem:[#allocation5 + $0x48] sm:$0xff]
    %v170 = vld [vmem:[#allocation5 + $0x50] sm:$0xf]
    %v171 = vld [vmem:[#allocation5 + $0x54] sm:$0xff]
    %v172 = vld [vmem:[#allocation5 + $0x5c] sm:$0xf]
    %v173 = vld [vmem:[#allocation5 + $0x60] sm:$0xff]
    %v174 = vld [vmem:[#allocation5 + $0x68] sm:$0xf]
    %v175 = vld [vmem:[#allocation5 + $0x6c] sm:$0xff]
    %v176 = vld [vmem:[#allocation5 + $0x74] sm:$0xf]
    %v177 = vld [vmem:[#allocation5 + $0x78] sm:$0xff]
    %v178 = vld [vmem:[#allocation5 + $0x80] sm:$0xf]
    %v179 = vld [vmem:[#allocation5 + $0x84] sm:$0xff]
    %v180 = vld [vmem:[#allocation5 + $0x8c] sm:$0xf]
    %v181 = vld [vmem:[#allocation5 + $0x90] sm:$0xff]
    %v182 = vld [vmem:[#allocation5 + $0x98] sm:$0xf]
    %v183 = vld [vmem:[#allocation5 + $0x9c] sm:$0xff]
    %v184 = vld [vmem:[#allocation5 + $0xa4] sm:$0xf]
    %v185 = vld [vmem:[#allocation5 + $0xa8] sm:$0xff]
    %v186 = vld [vmem:[#allocation5 + $0xb0] sm:$0xf]
    %v187 = vld [vmem:[#allocation5 + $0xb4] sm:$0xff]
    %v188 = vld [vmem:[#allocation5 + $0xbc] sm:$0xf]
    %v189 = vld [vmem:[%s3] sm:$0x7]
    %v191 = vlaneseq
    %v192 = vshrl.u32 %v191, 7
    %v193 = vsub.s32 0, %v192
    %v194 = vrot.slane %v189, %v193
    %v195 = vlaneseq
    %v196 = vshrl.u32 %v195, 7
    %v197 = vsub.s32 1, %v196
    %v198 = vrot.slane %v189, %v197
    %v199 = vlaneseq
    %v200 = vshrl.u32 %v199, 7
    %v201 = vsub.s32 2, %v200
    %v202 = vrot.slane %v189, %v201
    %v238 = vunpack.c.l.b16 %v157
    %v239 = vunpack.c.h.b16 %v157
    %v240 = vunpack.c.l.b16 %v158
    %v241 = vunpack.c.l.b16 %v159
    %v242 = vunpack.c.h.b16 %v159
    %v243 = vunpack.c.l.b16 %v160
    %v244 = vunpack.c.l.b16 %v161
    %v245 = vunpack.c.h.b16 %v161
    %v246 = vunpack.c.l.b16 %v162
    %v247 = vunpack.c.l.b16 %v163
    %v248 = vunpack.c.h.b16 %v163
    %v249 = vunpack.c.l.b16 %v164
    %v250 = vunpack.c.l.b16 %v165
    %v251 = vunpack.c.h.b16 %v165
    %v252 = vunpack.c.l.b16 %v166
    %v253 = vunpack.c.l.b16 %v167
    %v254 = vunpack.c.h.b16 %v167
    %v255 = vunpack.c.l.b16 %v168
    %v256 = vunpack.c.l.b16 %v169
    %v257 = vunpack.c.h.b16 %v169
    %v258 = vunpack.c.l.b16 %v170
    %v259 = vunpack.c.l.b16 %v171
    %v260 = vunpack.c.h.b16 %v171
    %v261 = vunpack.c.l.b16 %v172
    %v262 = vunpack.c.l.b16 %v173
    %v263 = vunpack.c.h.b16 %v173
    %v264 = vunpack.c.l.b16 %v174
    %v265 = vunpack.c.l.b16 %v175
    %v266 = vunpack.c.h.b16 %v175
    %v267 = vunpack.c.l.b16 %v176
    %v268 = vunpack.c.l.b16 %v177
    %v269 = vunpack.c.h.b16 %v177
    %v270 = vunpack.c.l.b16 %v178
    %v271 = vunpack.c.l.b16 %v179
    %v272 = vunpack.c.h.b16 %v179
    %v273 = vunpack.c.l.b16 %v180
    %v274 = vunpack.c.l.b16 %v181
    %v275 = vunpack.c.h.b16 %v181
    %v276 = vunpack.c.l.b16 %v182
    %v277 = vunpack.c.l.b16 %v183
    %v278 = vunpack.c.h.b16 %v183
    %v279 = vunpack.c.l.b16 %v184
    %v280 = vunpack.c.l.b16 %v185
    %v281 = vunpack.c.h.b16 %v185
    %v282 = vunpack.c.l.b16 %v186
    %v283 = vunpack.c.l.b16 %v187
    %v284 = vunpack.c.h.b16 %v187
    %v285 = vunpack.c.l.b16 %v188
    %v286 = vpack.c.b16 %v241, %v238
    %v287 = vpack.c.b16 %v242, %v239
    %v288 = vpack.c.b16 %v243, %v240
    %v289 = vpack.c.b16 %v247, %v244
    %v290 = vpack.c.b16 %v248, %v245
    %v291 = vpack.c.b16 %v249, %v246
    %v292 = vpack.c.b16 %v253, %v250
    %v293 = vpack.c.b16 %v254, %v251
    %v294 = vpack.c.b16 %v255, %v252
    %v295 = vpack.c.b16 %v259, %v256
    %v296 = vpack.c.b16 %v260, %v257
    %v297 = vpack.c.b16 %v261, %v258
    %v298 = vpack.c.b16 %v265, %v262
    %v299 = vpack.c.b16 %v266, %v263
    %v300 = vpack.c.b16 %v267, %v264
    %v301 = vpack.c.b16 %v271, %v268
    %v302 = vpack.c.b16 %v272, %v269
    %v303 = vpack.c.b16 %v273, %v270
    %v304 = vpack.c.b16 %v277, %v274
    %v305 = vpack.c.b16 %v278, %v275
    %v306 = vpack.c.b16 %v279, %v276
    %v307 = vpack.c.b16 %v283, %v280
    %v308 = vpack.c.b16 %v284, %v281
    %v309 = vpack.c.b16 %v285, %v282
    %334 = vmatprep.subr.bf16.mxu0 %v287
    %335 = vmatpush1.bf16.msra.mxu0 %v286
    %336 = vmatprep.subr.bf16.mxu0 %v290
    %337 = vmatpush1.bf16.msra.mxu0 %v289
    %338 = vmatprep.subr.bf16.mxu0 %v293
    %339 = vmatpush1.bf16.msra.mxu0 %v292
    %340 = vmatprep.subr.bf16.mxu0 %v296
    %341 = vmatpush1.bf16.msra.mxu0 %v295
    %342 = vmatprep.subr.bf16.mxu0 %v299
    %343 = vmatpush1.bf16.msra.mxu0 %v298
    %344 = vmatprep.subr.bf16.mxu0 %v302
    %345 = vmatpush1.bf16.msra.mxu0 %v301
    %346 = vmatprep.subr.bf16.mxu0 %v305
    %347 = vmatpush1.bf16.msra.mxu0 %v304
    %348 = vmatprep.subr.bf16.mxu0 %v308
    %349 = vmatpush1.bf16.msra.mxu0 %v307
    %350 = vmatprep.subr.bf16.mxu0 0
    %351 = vmatpush1.bf16.msra.mxu0 0
    %352 = vmatprep.subr.bf16.mxu0 0
    %353 = vmatpush1.bf16.msra.mxu0 0
    %354 = vmatprep.subr.bf16.mxu0 0
    %355 = vmatpush1.bf16.msra.mxu0 0
    %356 = vmatprep.subr.bf16.mxu0 0
    %357 = vmatpush1.bf16.msra.mxu0 0
    %358 = vmatprep.subr.bf16.mxu0 0
    %359 = vmatpush1.bf16.msra.mxu0 0
    %360 = vmatprep.subr.bf16.mxu0 0
    %361 = vmatpush1.bf16.msra.mxu0 0
    %362 = vmatprep.subr.bf16.mxu0 0
    %363 = vmatpush1.bf16.msra.mxu0 0
    %364 = vmatprep.subr.bf16.mxu0 0
    %365 = vmatpush1.bf16.msra.mxu0 0
    %366 = vmatprep.mubr.bf16.mxu0 0
    %367 = vmatmul.mubr.bf16.gmra.mrb[0].mxu0 %v155
    %v368 = vpop.f32.mrb[0].mxu0
    %v369 = vadd.f32 %v194, %v368
    %v370 = vpop.f32.mrb[0].mxu0
    %v371 = vadd.f32 %v198, %v370
    %v372 = vpop.f32.mrb[0].mxu0
    %v373 = vpop.f32.mrb[0].mxu0
    %374 = vdwg.mxu0
    %375 = vmatprep.subr.bf16.mxu0 0
    %376 = vmatpush1.bf16.msra.mxu0 %v288
    %377 = vmatprep.subr.bf16.mxu0 0
    %378 = vmatpush1.bf16.msra.mxu0 %v291
    %379 = vmatprep.subr.bf16.mxu0 0
    %380 = vmatpush1.bf16.msra.mxu0 %v294
    %381 = vmatprep.subr.bf16.mxu0 0
    %382 = vmatpush1.bf16.msra.mxu0 %v297
    %383 = vmatprep.subr.bf16.mxu0 0
    %384 = vmatpush1.bf16.msra.mxu0 %v300
    %385 = vmatprep.subr.bf16.mxu0 0
    %386 = vmatpush1.bf16.msra.mxu0 %v303
    %387 = vmatprep.subr.bf16.mxu0 0
    %388 = vmatpush1.bf16.msra.mxu0 %v306
    %389 = vmatprep.subr.bf16.mxu0 0
    %390 = vmatpush1.bf16.msra.mxu0 %v309
    %391 = vmatprep.subr.bf16.mxu0 0
    %392 = vmatpush1.bf16.msra.mxu0 0
    %393 = vmatprep.subr.bf16.mxu0 0
    %394 = vmatpush1.bf16.msra.mxu0 0
    %395 = vmatprep.subr.bf16.mxu0 0
    %396 = vmatpush1.bf16.msra.mxu0 0
    %397 = vmatprep.subr.bf16.mxu0 0
    %398 = vmatpush1.bf16.msra.mxu0 0
    %399 = vmatprep.subr.bf16.mxu0 0
    %400 = vmatpush1.bf16.msra.mxu0 0
    %401 = vmatprep.subr.bf16.mxu0 0
    %402 = vmatpush1.bf16.msra.mxu0 0
    %403 = vmatprep.subr.bf16.mxu0 0
    %404 = vmatpush1.bf16.msra.mxu0 0
    %405 = vmatprep.subr.bf16.mxu0 0
    %406 = vmatpush1.bf16.msra.mxu0 0
    %407 = vmatprep.mubr.bf16.mxu0 0
    %408 = vmatmul.mubr.bf16.gmra.mrb[0].mxu0 %v155
    %v409 = vpop.f32.mrb[0].mxu0
    %v410 = vadd.f32 %v202, %v409
    %v411 = vpop.f32.mrb[0].mxu0
    %v412 = vpop.f32.mrb[0].mxu0
    %v413 = vpop.f32.mrb[0].mxu0
    %414 = vdwg.mxu0
    %v415 = vpack.c.bf16 %v156, %v156
    %v416 = vld [vmem:[#allocation7] sm:$0xff]
    %v417 = vld [vmem:[#allocation7 + $0x8] sm:$0xf]
    %v418 = vld [vmem:[#allocation7 + $0xc] sm:$0xff]
    %v419 = vld [vmem:[#allocation7 + $0x14] sm:$0xf]
    %v420 = vld [vmem:[#allocation7 + $0x18] sm:$0xff]
    %v421 = vld [vmem:[#allocation7 + $0x20] sm:$0xf]
    %v422 = vld [vmem:[#allocation7 + $0x24] sm:$0xff]
    %v423 = vld [vmem:[#allocation7 + $0x2c] sm:$0xf]
    %v424 = vld [vmem:[#allocation7 + $0x30] sm:$0xff]
    %v425 = vld [vmem:[#allocation7 + $0x38] sm:$0xf]
    %v426 = vld [vmem:[#allocation7 + $0x3c] sm:$0xff]
    %v427 = vld [vmem:[#allocation7 + $0x44] sm:$0xf]
    %v428 = vld [vmem:[#allocation7 + $0x48] sm:$0xff]
    %v429 = vld [vmem:[#allocation7 + $0x50] sm:$0xf]
    %v430 = vld [vmem:[#allocation7 + $0x54] sm:$0xff]
    %v431 = vld [vmem:[#allocation7 + $0x5c] sm:$0xf]
    %v432 = vld [vmem:[#allocation7 + $0x60] sm:$0xff]
    %v433 = vld [vmem:[#allocation7 + $0x68] sm:$0xf]
    %v434 = vld [vmem:[#allocation7 + $0x6c] sm:$0xff]
    %v435 = vld [vmem:[#allocation7 + $0x74] sm:$0xf]
    %v436 = vld [vmem:[#allocation7 + $0x78] sm:$0xff]
    %v437 = vld [vmem:[#allocation7 + $0x80] sm:$0xf]
    %v438 = vld [vmem:[#allocation7 + $0x84] sm:$0xff]
    %v439 = vld [vmem:[#allocation7 + $0x8c] sm:$0xf]
    %v440 = vld [vmem:[#allocation7 + $0x90] sm:$0xff]
    %v441 = vld [vmem:[#allocation7 + $0x98] sm:$0xf]
    %v442 = vld [vmem:[#allocation7 + $0x9c] sm:$0xff]
    %v443 = vld [vmem:[#allocation7 + $0xa4] sm:$0xf]
    %v444 = vld [vmem:[#allocation7 + $0xa8] sm:$0xff]
    %v445 = vld [vmem:[#allocation7 + $0xb0] sm:$0xf]
    %v446 = vld [vmem:[#allocation7 + $0xb4] sm:$0xff]
    %v447 = vld [vmem:[#allocation7 + $0xbc] sm:$0xf]
    %v448 = vld [vmem:[%s5] sm:$0x7]
    %v450 = vlaneseq
    %v451 = vshrl.u32 %v450, 7
    %v452 = vsub.s32 0, %v451
    %v453 = vrot.slane %v448, %v452
    %v454 = vlaneseq
    %v455 = vshrl.u32 %v454, 7
    %v456 = vsub.s32 1, %v455
    %v457 = vrot.slane %v448, %v456
    %v458 = vlaneseq
    %v459 = vshrl.u32 %v458, 7
    %v460 = vsub.s32 2, %v459
    %v461 = vrot.slane %v448, %v460
    %v497 = vunpack.c.l.b16 %v416
    %v498 = vunpack.c.h.b16 %v416
    %v499 = vunpack.c.l.b16 %v417
    %v500 = vunpack.c.l.b16 %v418
    %v501 = vunpack.c.h.b16 %v418
    %v502 = vunpack.c.l.b16 %v419
    %v503 = vunpack.c.l.b16 %v420
    %v504 = vunpack.c.h.b16 %v420
    %v505 = vunpack.c.l.b16 %v421
    %v506 = vunpack.c.l.b16 %v422
    %v507 = vunpack.c.h.b16 %v422
    %v508 = vunpack.c.l.b16 %v423
    %v509 = vunpack.c.l.b16 %v424
    %v510 = vunpack.c.h.b16 %v424
    %v511 = vunpack.c.l.b16 %v425
    %v512 = vunpack.c.l.b16 %v426
    %v513 = vunpack.c.h.b16 %v426
    %v514 = vunpack.c.l.b16 %v427
    %v515 = vunpack.c.l.b16 %v428
    %v516 = vunpack.c.h.b16 %v428
    %v517 = vunpack.c.l.b16 %v429
    %v518 = vunpack.c.l.b16 %v430
    %v519 = vunpack.c.h.b16 %v430
    %v520 = vunpack.c.l.b16 %v431
    %v521 = vunpack.c.l.b16 %v432
    %v522 = vunpack.c.h.b16 %v432
    %v523 = vunpack.c.l.b16 %v433
    %v524 = vunpack.c.l.b16 %v434
    %v525 = vunpack.c.h.b16 %v434
    %v526 = vunpack.c.l.b16 %v435
    %v527 = vunpack.c.l.b16 %v436
    %v528 = vunpack.c.h.b16 %v436
    %v529 = vunpack.c.l.b16 %v437
    %v530 = vunpack.c.l.b16 %v438
    %v531 = vunpack.c.h.b16 %v438
    %v532 = vunpack.c.l.b16 %v439
    %v533 = vunpack.c.l.b16 %v440
    %v534 = vunpack.c.h.b16 %v440
    %v535 = vunpack.c.l.b16 %v441
    %v536 = vunpack.c.l.b16 %v442
    %v537 = vunpack.c.h.b16 %v442
    %v538 = vunpack.c.l.b16 %v443
    %v539 = vunpack.c.l.b16 %v444
    %v540 = vunpack.c.h.b16 %v444
    %v541 = vunpack.c.l.b16 %v445
    %v542 = vunpack.c.l.b16 %v446
    %v543 = vunpack.c.h.b16 %v446
    %v544 = vunpack.c.l.b16 %v447
    %v545 = vpack.c.b16 %v500, %v497
    %v546 = vpack.c.b16 %v501, %v498
    %v547 = vpack.c.b16 %v502, %v499
    %v548 = vpack.c.b16 %v506, %v503
    %v549 = vpack.c.b16 %v507, %v504
    %v550 = vpack.c.b16 %v508, %v505
    %v551 = vpack.c.b16 %v512, %v509
    %v552 = vpack.c.b16 %v513, %v510
    %v553 = vpack.c.b16 %v514, %v511
    %v554 = vpack.c.b16 %v518, %v515
    %v555 = vpack.c.b16 %v519, %v516
    %v556 = vpack.c.b16 %v520, %v517
    %v557 = vpack.c.b16 %v524, %v521
    %v558 = vpack.c.b16 %v525, %v522
    %v559 = vpack.c.b16 %v526, %v523
    %v560 = vpack.c.b16 %v530, %v527
    %v561 = vpack.c.b16 %v531, %v528
    %v562 = vpack.c.b16 %v532, %v529
    %v563 = vpack.c.b16 %v536, %v533
    %v564 = vpack.c.b16 %v537, %v534
    %v565 = vpack.c.b16 %v538, %v535
    %v566 = vpack.c.b16 %v542, %v539
    %v567 = vpack.c.b16 %v543, %v540
    %v568 = vpack.c.b16 %v544, %v541
    %593 = vmatprep.subr.bf16.mxu0 %v546
    %594 = vmatpush1.bf16.msra.mxu0 %v545
    %595 = vmatprep.subr.bf16.mxu0 %v549
    %596 = vmatpush1.bf16.msra.mxu0 %v548
    %597 = vmatprep.subr.bf16.mxu0 %v552
    %598 = vmatpush1.bf16.msra.mxu0 %v551
    %599 = vmatprep.subr.bf16.mxu0 %v555
    %600 = vmatpush1.bf16.msra.mxu0 %v554
    %601 = vmatprep.subr.bf16.mxu0 %v558
    %602 = vmatpush1.bf16.msra.mxu0 %v557
    %603 = vmatprep.subr.bf16.mxu0 %v561
    %604 = vmatpush1.bf16.msra.mxu0 %v560
    %605 = vmatprep.subr.bf16.mxu0 %v564
    %606 = vmatpush1.bf16.msra.mxu0 %v563
    %607 = vmatprep.subr.bf16.mxu0 %v567
    %608 = vmatpush1.bf16.msra.mxu0 %v566
    %609 = vmatprep.subr.bf16.mxu0 0
    %610 = vmatpush1.bf16.msra.mxu0 0
    %611 = vmatprep.subr.bf16.mxu0 0
    %612 = vmatpush1.bf16.msra.mxu0 0
    %613 = vmatprep.subr.bf16.mxu0 0
    %614 = vmatpush1.bf16.msra.mxu0 0
    %615 = vmatprep.subr.bf16.mxu0 0
    %616 = vmatpush1.bf16.msra.mxu0 0
    %617 = vmatprep.subr.bf16.mxu0 0
    %618 = vmatpush1.bf16.msra.mxu0 0
    %619 = vmatprep.subr.bf16.mxu0 0
    %620 = vmatpush1.bf16.msra.mxu0 0
    %621 = vmatprep.subr.bf16.mxu0 0
    %622 = vmatpush1.bf16.msra.mxu0 0
    %623 = vmatprep.subr.bf16.mxu0 0
    %624 = vmatpush1.bf16.msra.mxu0 0
    %625 = vmatprep.mubr.bf16.mxu0 0
    %626 = vmatmul.mubr.bf16.gmra.mrb[0].mxu0 %v415
    %v627 = vpop.f32.mrb[0].mxu0
    %v628 = vadd.f32 %v453, %v627
    %v629 = vpop.f32.mrb[0].mxu0
    %v630 = vadd.f32 %v457, %v629
    %v631 = vpop.f32.mrb[0].mxu0
    %v632 = vpop.f32.mrb[0].mxu0
    %633 = vdwg.mxu0
    %634 = vmatprep.subr.bf16.mxu0 0
    %635 = vmatpush1.bf16.msra.mxu0 %v547
    %636 = vmatprep.subr.bf16.mxu0 0
    %637 = vmatpush1.bf16.msra.mxu0 %v550
    %638 = vmatprep.subr.bf16.mxu0 0
    %639 = vmatpush1.bf16.msra.mxu0 %v553
    %640 = vmatprep.subr.bf16.mxu0 0
    %641 = vmatpush1.bf16.msra.mxu0 %v556
    %642 = vmatprep.subr.bf16.mxu0 0
    %643 = vmatpush1.bf16.msra.mxu0 %v559
    %644 = vmatprep.subr.bf16.mxu0 0
    %645 = vmatpush1.bf16.msra.mxu0 %v562
    %646 = vmatprep.subr.bf16.mxu0 0
    %647 = vmatpush1.bf16.msra.mxu0 %v565
    %648 = vmatprep.subr.bf16.mxu0 0
    %649 = vmatpush1.bf16.msra.mxu0 %v568
    %650 = vmatprep.subr.bf16.mxu0 0
    %651 = vmatpush1.bf16.msra.mxu0 0
    %652 = vmatprep.subr.bf16.mxu0 0
    %653 = vmatpush1.bf16.msra.mxu0 0
    %654 = vmatprep.subr.bf16.mxu0 0
    %655 = vmatpush1.bf16.msra.mxu0 0
    %656 = vmatprep.subr.bf16.mxu0 0
    %657 = vmatpush1.bf16.msra.mxu0 0
    %658 = vmatprep.subr.bf16.mxu0 0
    %659 = vmatpush1.bf16.msra.mxu0 0
    %660 = vmatprep.subr.bf16.mxu0 0
    %661 = vmatpush1.bf16.msra.mxu0 0
    %662 = vmatprep.subr.bf16.mxu0 0
    %663 = vmatpush1.bf16.msra.mxu0 0
    %664 = vmatprep.subr.bf16.mxu0 0
    %665 = vmatpush1.bf16.msra.mxu0 0
    %666 = vmatprep.mubr.bf16.mxu0 0
    %667 = vmatmul.mubr.bf16.gmra.mrb[0].mxu0 %v415
    %v668 = vpop.f32.mrb[0].mxu0
    %v669 = vadd.f32 %v461, %v668
    %v670 = vpop.f32.mrb[0].mxu0
    %v671 = vpop.f32.mrb[0].mxu0
    %v672 = vpop.f32.mrb[0].mxu0
    %673 = vdwg.mxu0
    %v674 = vadd.f32 %v369, %v628
    %v675 = vadd.f32 %v371, %v630
    %v676 = vxor.u32 %v674, 2147483648
    %v677 = vxor.u32 %v675, 2147483648
    %v678 = vmul.f32 %v676, 1.442695
    %v679 = vpow.pop %v678
    %v680 = vmul.f32 %v677, 1.442695
    %v681 = vpow.pop %v680
    %v682 = vadd.f32 %v679, 1.0
    %v683 = vadd.f32 %v681, 1.0
    %v684 = vrcp.pop %v682
    %v685 = vmul.f32 1.0, %v684
    %v686 = vrcp.pop %v683
    %v687 = vmul.f32 1.0, %v686
    %v688 = vmul.f32 %v687, %v669
    %v689 = vadd.f32 %v410, %v688
    %v690 = vtanh.pop %v689
    %v691 = vsub.f32 1.0, %v685
    %v692 = vmul.f32 %v691, %v156
    %v693 = vmul.f32 %v685, %v690
    %v694 = vadd.f32 %v692, %v693
    %695 = vst [vmem:[#allocation8] sm:$0xff] %v694
    // Predicated region
    $region42: #{tpu_custom_call.1} parent=1 // pred_check
      _
    $region43: #{tpu_custom_call.1} parent=1 // pred_check_branch
      %697 = sbr.rel (0) target = $region45
    $region44: #{tpu_custom_call.1} parent=1 // pred_region
      %s699 = ssub.s32 128, 128
      %700 = vsyncadd [#allocation4], %s699
      %s702 = sshll.u32 [#allocation8], 4
      %s703 = int_to_ptr.vmem [resolvable:$true] %s702
      %705 = dma.vmem_to_hbm [thread:$0]  %s703, 128, %s7, [#allocation4]
    $region45: #{tpu_custom_call.1} parent=1 // pred_fallthru
      _
    // Predicated region
    $region46: #{tpu_custom_call.1} parent=1 // pred_check
      _
    $region47: #{tpu_custom_call.1} parent=1 // pred_check_branch
      %707 = sbr.rel (0) target = $region49
    $region48: #{tpu_custom_call.1} parent=1 // pred_region
      %708 = dma.done [#allocation4], 128
    $region49: #{tpu_custom_call.1} parent=1 // pred_fallthru
      _
    %709 = vsyncpa [#allocation3], 1
    %710 = vsyncpa [#allocation6], 1
    %711 = vsyncpa [#allocation4], 1

</llo_original>
